<compile_context>
chip_gen: v5e
topology: v5e:2x2
jax: 0.10.0
libtpu: 0.0.40
codegen_flags: <defaults>
</compile_context>

<pallas_src>
import math
import functools

import jax
import jax.numpy as jnp
from jax.experimental import pallas as pl
from jax.experimental.pallas import tpu as pltpu


def _round_up(x, m):
    return (x + m - 1) // m * m


def _out_dim(i, k, s, p, d):
    return (i + 2 * p - (d * (k - 1) + 1)) // s + 1


def _deform_conv_kernel(cols_ref, w_ref, b_ref, o_ref, *,
                        groups, cout_per_g_p, ck_per_g_p):
    # cols_ref block: (1, CKp, TL) bf16 -- trilinear-combined im2col columns
    # w_ref:  (Coutp, ck_per_g_p) bf16 (resident) ; b_ref: (Coutp, 1) f32 (resident)
    # o_ref block: (1, Coutp, TL) f32
    cols = cols_ref[0]                                   # (CKp, TL)
    if groups == 1:
        acc = jnp.dot(w_ref[...], cols, preferred_element_type=jnp.float32)
        o_ref[0] = acc + b_ref[...]
    else:
        # groups is small in practice; static unroll keeps the slice offsets
        # compile-time constants (multiples of 8 / 16 -> aligned, unmasked).
        # TODO(synk): for large `groups` switch to lax.fori_loop + pl.ds.
        for g in range(groups):
            r0 = g * cout_per_g_p
            c0 = g * ck_per_g_p
            acc = jnp.dot(w_ref[r0:r0 + cout_per_g_p, :],
                          cols[c0:c0 + ck_per_g_p, :],
                          preferred_element_type=jnp.float32)
            o_ref[0, r0:r0 + cout_per_g_p, :] = (
                acc + b_ref[r0:r0 + cout_per_g_p, :])


def _trilinear_im2col(x, offset, kernel_size, stride, padding, dilation,
                      deformable_groups):
    """Host-side deformable im2col with the 8-corner combine fused in f32.

    Returns cols of shape (N, C*K, L) float32 with row = c*K + k (c = global
    input channel, k = tap), matching weight.reshape(Cout, Cin_g*K)."""
    N, C, T, H, W = x.shape
    KT, KH, KW = kernel_size
    K = KT * KH * KW
    dg = deformable_groups
    Cg = C // dg
    st, sh, sw = stride
    pt, ph, pw = padding
    dlt, dlh, dlw = dilation
    To = _out_dim(T, KT, st, pt, dlt)
    Ho = _out_dim(H, KH, sh, ph, dlh)
    Wo = _out_dim(W, KW, sw, pw, dlw)
    L = To * Ho * Wo

    off = offset.reshape(N, dg, K, 3, To, Ho, Wo).astype(jnp.float32)

    ktg, khg, kwg = jnp.meshgrid(jnp.arange(KT), jnp.arange(KH),
                                 jnp.arange(KW), indexing='ij')
    ktg = ktg.reshape(K)
    khg = khg.reshape(K)
    kwg = kwg.reshape(K)
    to = jnp.arange(To)
    ho = jnp.arange(Ho)
    wo = jnp.arange(Wo)

    # base (un-deformed) sampling grid, shape (K, To, Ho, Wo)
    bt = (to[None, :, None, None] * st - pt +
          ktg[:, None, None, None] * dlt).astype(jnp.float32)
    bh = (ho[None, None, :, None] * sh - ph +
          khg[:, None, None, None] * dlh).astype(jnp.float32)
    bw = (wo[None, None, None, :] * sw - pw +
          kwg[:, None, None, None] * dlw).astype(jnp.float32)

    # deformed coords, shape (N, dg, K, To, Ho, Wo)
    t = bt[None, None] + off[:, :, :, 0]
    h = bh[None, None] + off[:, :, :, 1]
    w = bw[None, None] + off[:, :, :, 2]

    # DCN-v1 sampling validity (same condition as the CUDA im2col kernel)
    valid = (t > -1.) & (h > -1.) & (w > -1.) & (t < T) & (h < H) & (w < W)

    t0 = jnp.floor(t)
    h0 = jnp.floor(h)
    w0 = jnp.floor(w)
    lt = t - t0
    lh = h - h0
    lw = w - w0

    x_flat = x.astype(jnp.float32).reshape(N, dg, Cg, T * H * W)
    # TODO(synk): the data-dependent gather stays in plain JAX (no clean Pallas
    # TPU gather); an in-kernel gather (x in pl.ANY + scalar-prefetched index
    # tables + manual make_async_copy) is the remaining structural follow-on.
    gather = jax.vmap(jax.vmap(lambda xf, idx: jnp.take(xf, idx, axis=1)))

    cols = jnp.zeros((N, dg, Cg, K, L), jnp.float32)
    for ct in (0, 1):
        for ch in (0, 1):
            for cw in (0, 1):
                ti = t0 + ct
                hi = h0 + ch
                wi = w0 + cw
                inb = ((ti >= 0) & (ti < T) & (hi >= 0) & (hi < H) &
                       (wi >= 0) & (wi < W))
                wt = ((lt if ct else 1. - lt) *
                      (lh if ch else 1. - lh) *
                      (lw if cw else 1. - lw))
                wt = jnp.where(inb & valid, wt, 0.)
                tic = jnp.clip(ti, 0, T - 1).astype(jnp.int32)
                hic = jnp.clip(hi, 0, H - 1).astype(jnp.int32)
                wic = jnp.clip(wi, 0, W - 1).astype(jnp.int32)
                flat = (tic * (H * W) + hic * W + wic).reshape(N, dg, K * L)
                v = gather(x_flat, flat).reshape(N, dg, Cg, K, L)
                # Fused f32 corner combine; cg-broadcast of wt happens here.
                cols = cols + v * wt.reshape(N, dg, 1, K, L)

    return cols.reshape(N, C * K, L), (To, Ho, Wo)


def _pick_tile_l(L, N, per_tl_bytes, resident_bytes, vmem_budget):
    """Auto-size the lane tile against the VMEM budget (multiple of 128)."""
    lp128 = _round_up(L, 128)
    avail = max(vmem_budget - resident_bytes, per_tl_bytes * 128)
    tl_max = max(128, (avail // per_tl_bytes) // 128 * 128)
    tl_max = min(tl_max, 2048, lp128)
    tl = None
    if L % 128 == 0:
        # Prefer a tile that divides L exactly: Lp == L -> no lane padding and
        # the post-kernel crop along L is a no-op (no extra HBM copy).
        cand = tl_max
        while cand >= 128:
            if L % cand == 0:
                tl = cand
                break
            cand -= 128
    if tl is None:
        tl = tl_max
    # v7x megacore: keep at least a few grid steps so both TensorCores get
    # work; only trade away very large tiles.
    while tl > 512 and N * pl.cdiv(L, tl) < 4:
        tl = max(512, (tl // 2) // 128 * 128)
    return tl


def deform_conv3d(x, offset, weight, bias, stride, padding, dilation,
                  groups=1, deformable_groups=1):
    N, C, T, H, W = x.shape
    Cout, Cin_g, KT, KH, KW = weight.shape
    assert Cin_g * groups == C
    K = KT * KH * KW
    dg = deformable_groups
    assert C % dg == 0

    To = _out_dim(T, KT, stride[0], padding[0], dilation[0])
    Ho = _out_dim(H, KH, stride[1], padding[1], dilation[1])
    Wo = _out_dim(W, KW, stride[2], padding[2], dilation[2])
    L = To * Ho * Wo
    assert offset.shape == (N, 3 * dg * K, To, Ho, Wo)

    # ---- host-side im2col with fused f32 trilinear combine -------------------
    cols, _ = _trilinear_im2col(x, offset, (KT, KH, KW), stride, padding,
                                dilation, dg)

    ck_per_g = Cin_g * K
    cout_per_g = Cout // groups
    # per-group alignment: output rows -> 8 sublanes (f32), input rows -> 16 (bf16)
    cout_per_g_p = _round_up(cout_per_g, 8)
    ck_per_g_p = _round_up(ck_per_g, 16) if groups > 1 else ck_per_g
    CKp = groups * ck_per_g_p
    Coutp = groups * cout_per_g_p

    # Resident weight / bias, padded per group so in-kernel slices are aligned.
    w_flat = weight.reshape(groups, cout_per_g, ck_per_g).astype(jnp.bfloat16)
    b_col = bias.reshape(groups, cout_per_g, 1).astype(jnp.float32)
    if cout_per_g_p > cout_per_g or ck_per_g_p > ck_per_g:
        w_flat = jnp.pad(w_flat, ((0, 0), (0, cout_per_g_p - cout_per_g),
                                  (0, ck_per_g_p - ck_per_g)))
        b_col = jnp.pad(b_col, ((0, 0), (0, cout_per_g_p - cout_per_g), (0, 0)))
    w_flat = w_flat.reshape(Coutp, ck_per_g_p)
    b_col = b_col.reshape(Coutp, 1)

    # Pad cols rows per group and cast to bf16 (MXU inputs only; the accurate
    # f32 combine already happened above).
    cols = cols.reshape(N, groups, ck_per_g, L)
    if ck_per_g_p > ck_per_g:
        cols = jnp.pad(cols, ((0, 0), (0, 0), (0, ck_per_g_p - ck_per_g), (0, 0)))
    cols = cols.reshape(N, CKp, L).astype(jnp.bfloat16)

    # ---- lane-tile selection against a per-generation VMEM budget ------------
    try:
        vmem_cap = int(pltpu.get_tpu_info().vmem_capacity_bytes)
    except Exception:
        vmem_cap = 64 * 1024 * 1024          # conservative (v7x-sized) fallback
    vmem_budget = min(vmem_cap // 4, 24 * 1024 * 1024)
    # per-column bytes: double-buffered cols(bf16) + out(f32) + acc temporaries
    per_tl_bytes = 2 * CKp * 2 + 2 * Coutp * 4 + cout_per_g_p * 4
    resident_bytes = 2 * (Coutp * ck_per_g_p * 2 + Coutp * 4)   # weight + bias
    TL = _pick_tile_l(L, N, per_tl_bytes, resident_bytes, vmem_budget)
    Lp = _round_up(L, TL)
    if Lp > L:
        cols = jnp.pad(cols, ((0, 0), (0, 0), (0, Lp - L)))

    # Only raise the scoped-VMEM limit when the footprint may exceed the
    # generation default, and cap it well below physical VMEM (40 MiB on v7x's
    # 64 MiB); prefer the smaller auto-sized TL over a larger limit.
    est_bytes = resident_bytes + per_tl_bytes * TL + (1 << 20)
    cp_kwargs = dict(dimension_semantics=("parallel", "parallel"))
    if est_bytes > 12 * 1024 * 1024:
        cp_kwargs["vmem_limit_bytes"] = int(
            min(_round_up(2 * est_bytes, 1 << 20), (vmem_cap * 5) // 8))

    kernel = functools.partial(_deform_conv_kernel, groups=groups,
                               cout_per_g_p=cout_per_g_p,
                               ck_per_g_p=ck_per_g_p)

    # TODO(synk): for very large C*K or Cout, additionally tile the CK
    # reduction axis (last grid axis, "arbitrary", f32 VMEM accumulator with
    # pl.when init/finalize) and/or tile Cout into resident row blocks.
    out = pl.pallas_call(
        kernel,
        out_shape=jax.ShapeDtypeStruct((N, Coutp, Lp), jnp.float32),
        grid=(N, Lp // TL),
        in_specs=[
            pl.BlockSpec((1, CKp, TL), lambda n, l: (n, 0, l)),
            pl.BlockSpec((Coutp, ck_per_g_p), lambda n, l: (0, 0)),
            pl.BlockSpec((Coutp, 1), lambda n, l: (0, 0)),
        ],
        out_specs=pl.BlockSpec((1, Coutp, TL), lambda n, l: (n, 0, l)),
        compiler_params=pltpu.CompilerParams(**cp_kwargs),
    )(cols, w_flat, b_col)

    out = out.reshape(N, groups, cout_per_g_p, Lp)[:, :, :cout_per_g, :L]
    return out.reshape(N, Cout, To, Ho, Wo)


if __name__ == "__main__":
    key = jax.random.PRNGKey(0)
    k1, k2, k3, k4 = jax.random.split(key, 4)

    # Small shapes consistent with DeformConv(in=4, out=8, kernel=3, stride=1, pad=1)
    N, Cin, Cout = 2, 4, 8
    T, H, W = 4, 8, 8
    KT = KH = KW = 3
    stride = (1, 1, 1)
    padding = (1, 1, 1)
    dilation = (1, 1, 1)
    groups = 1
    dg = 1  # deformable_groups
    K = KT * KH * KW
    To, Ho, Wo = T, H, W  # stride 1, pad 1, kernel 3

    # reset_parameters(): kaiming_uniform_(a=sqrt(5)) => U(-1/sqrt(fan_in), 1/sqrt(fan_in))
    fan_in = (Cin // groups) * K
    bound = 1.0 / math.sqrt(fan_in)
    weight = jax.random.uniform(k1, (Cout, Cin // groups, KT, KH, KW),
                                jnp.float32, minval=-bound, maxval=bound)
    bias = jax.random.uniform(k2, (Cout,), jnp.float32,
                              minval=-bound, maxval=bound)

    x = jax.random.normal(k3, (N, Cin, T, H, W), jnp.float32)
    offset = 0.5 * jax.random.normal(k4, (N, 3 * dg * K, To, Ho, Wo),
                                     jnp.float32)

    out = deform_conv3d(x, offset, weight, bias, stride, padding, dilation,
                        groups=groups, deformable_groups=dg)
    jax.block_until_ready(out)
    assert out.shape == (N, Cout, To, Ho, Wo)
    assert out.dtype == jnp.float32
    assert bool(jnp.all(jnp.isfinite(out)))

    # Pure-JAX f32 reference (groups == 1): same im2col, dense einsum.
    cols_ref, _ = _trilinear_im2col(x, offset, (KT, KH, KW), stride, padding,
                                    dilation, dg)
    ref = (jnp.einsum('ok,nkl->nol',
                      weight.reshape(Cout, (Cin // groups) * K), cols_ref)
           + bias[None, :, None]).reshape(N, Cout, To, Ho, Wo)
    assert bool(jnp.allclose(out, ref, rtol=3e-2, atol=3e-2)), \
        float(jnp.max(jnp.abs(out - ref)))

    print("KERNEL_OK")
</pallas_src>

<mosaic_0001>
module attributes {stable_mosaic.version = 11 : i64} {
  func.func @_deform_conv_kernel(%arg0: i32, %arg1: i32, %arg2: memref<1x108x256xbf16, #tpu.memory_space<vmem>>, %arg3: memref<8x108xbf16, #tpu.memory_space<vmem>>, %arg4: memref<8x1xf32, #tpu.memory_space<vmem>>, %arg5: memref<1x8x256xf32, #tpu.memory_space<vmem>>) attributes {dimension_semantics = [#tpu.dimension_semantics<parallel>, #tpu.dimension_semantics<parallel>], iteration_bounds = array<i64: 2, 1>, scalar_prefetch = 0 : i64, scratch_operands = 0 : i64, tpu.core_type = #tpu.core_type<tc>, window_params = [{transform_indices = @transform_0, window_bounds = array<i64: 1, 108, 256>}, {pipeline_mode = #tpu.pipeline_mode<synchronous>, transform_indices = @transform_1, window_bounds = array<i64: 8, 108>}, {pipeline_mode = #tpu.pipeline_mode<synchronous>, transform_indices = @transform_2, window_bounds = array<i64: 8, 1>}, {transform_indices = @transform_3, window_bounds = array<i64: 1, 8, 256>}]} {
    %c0 = arith.constant 0 : index
    %c0_0 = arith.constant 0 : index
    %c0_1 = arith.constant 0 : index
    %0 = vector.load %arg2[%c0, %c0_0, %c0_1] : memref<1x108x256xbf16, #tpu.memory_space<vmem>>, vector<1x108x256xbf16>
    %1 = vector.shape_cast %0 : vector<1x108x256xbf16> to vector<108x256xbf16>
    %c0_2 = arith.constant 0 : index
    %c0_3 = arith.constant 0 : index
    %2 = vector.load %arg3[%c0_2, %c0_3] : memref<8x108xbf16, #tpu.memory_space<vmem>>, vector<8x108xbf16>
    %cst = arith.constant dense<0.000000e+00> : vector<8x256xf32>
    %3 = tpu.matmul %2, %1, %cst {dimension_numbers = #tpu.dot_dimension_numbers<[1], [0], [0], [1], [0, 0, 1, 1], [], []>} : vector<8x108xbf16>, vector<108x256xbf16>, vector<8x256xf32> -> vector<8x256xf32>
    %c0_4 = arith.constant 0 : index
    %c0_5 = arith.constant 0 : index
    %4 = vector.load %arg4[%c0_4, %c0_5] : memref<8x1xf32, #tpu.memory_space<vmem>>, vector<8x1xf32>
    %5 = vector.broadcast %4 : vector<8x1xf32> to vector<8x256xf32>
    %6 = arith.addf %3, %5 : vector<8x256xf32>
    %c0_6 = arith.constant 0 : index
    %c0_7 = arith.constant 0 : index
    %c0_8 = arith.constant 0 : index
    %7 = vector.load %arg5[%c0_6, %c0_7, %c0_8] : memref<1x8x256xf32, #tpu.memory_space<vmem>>, vector<1x8x256xf32>
    %8 = vector.shape_cast %7 : vector<1x8x256xf32> to vector<8x256xf32>
    %9 = vector.shape_cast %6 : vector<8x256xf32> to vector<1x8x256xf32>
    tpu.vector_store %arg5[%c0_6, %c0_7, %c0_8], %9 {strides = array<i32>} : memref<1x8x256xf32, #tpu.memory_space<vmem>>, vector<1x8x256xf32>,
    return
  }
  func.func @transform_0(%arg0: i32, %arg1: i32) -> (i32, i32, i32) {
    %c0_i32 = arith.constant 0 : i32
    %c0_i32_0 = arith.constant 0 : i32
    return %arg0, %c0_i32, %arg1 : i32, i32, i32
  }
  func.func @transform_1(%arg0: i32, %arg1: i32) -> (i32, i32) {
    %c0_i32 = arith.constant 0 : i32
    %c0_i32_0 = arith.constant 0 : i32
    %c0_i32_1 = arith.constant 0 : i32
    return %c0_i32, %c0_i32_0 : i32, i32
  }
  func.func @transform_2(%arg0: i32, %arg1: i32) -> (i32, i32) {
    %c0_i32 = arith.constant 0 : i32
    %c0_i32_0 = arith.constant 0 : i32
    %c0_i32_1 = arith.constant 0 : i32
    return %c0_i32, %c0_i32_0 : i32, i32
  }
  func.func @transform_3(%arg0: i32, %arg1: i32) -> (i32, i32, i32) {
    %c0_i32 = arith.constant 0 : i32
    %c0_i32_0 = arith.constant 0 : i32
    return %arg0, %c0_i32, %arg1 : i32, i32, i32
  }
}

</mosaic_0001>

<llo_original>
// kernel: tpu_custom_call.1
$region0: #{tpu_custom_call.1}
  #allocation0 [shape = 'u32[]', space=smem, size = 0x4, offset = 0x4, fixed_abs, tag = 'smem constant byte address 0x4 - core index']
  #allocation1 [shape = 'u32[72,128]{1,0:T(1,128)}', space=vmem, size = 0x9000, scoped, tag = 'internal scratch']
  %s0 = inlined_call_operand.vmem [shape: bf16[2,108,256], index: 0, kind: input, shape index: {}]
  %s1 = inlined_call_operand.vmem [shape: bf16[8,108], index: 1, kind: input, shape index: {}]
  %s2 = inlined_call_operand.vmem [shape: f32[8,1], index: 2, kind: input, shape index: {}]
  %s3 = inlined_call_operand.hbm [shape: f32[2,8,256], index: 3, kind: output, shape index: {}]
  %s4 = sld [smem:[#allocation0]]
  $region45: #{tpu_custom_call.1} parent=0
    _
  %s6 = ssub.s32 1, %s4
  %s7 = scalar_select 0, %s6, %s4
  $region1: #{tpu_custom_call.1} parent=0
    #allocation2 [shape = 'u8[16384]{0}', space=vmem, size = 0x4000, scoped, tag = 'output window, operand 0']
    #allocation3 [shape = 's32[2]{0}', space=sflag, size = 0x8, scoped, tag = 'scoped memory for tpu_custom_call.1']
    %8 = vsyncpa [#allocation3], 0
    %s9 = scalar_lea.sflag [#allocation3], 1
    %10 = vsyncpa %s9, 0
    loop: start=0, step=1, limit=4
    $region2: #{tpu_custom_call.1} parent=1 // loop_pre_header
      _
    $region3: #{tpu_custom_call.1} parent=1 // loop_header
      %s12 = sphi 0, %s16
      %p13 = scmp.ge.s32.totalorder %s12, 4
      %s19 = sphi 0, %s31
      %s20 = sphi 0, %s27
      %s21 = sphi 0, %s19
      %s22 = sphi 0, %s20
      %s23 = sphi 0, %s21
      %s24 = sphi 0, %s22
      %s36 = sphi 0, %s38
      %s39 = sphi 0, %s36
      %s40 = sphi 0, %s39
      %s56 = sphi 0, %s40
      %s60 = sphi 0, %s60
      %s62 = sphi 0, %s60
      %s63 = sphi 0, %s62
      %s77 = sphi 0, %s63
      %s81 = sphi 0, %s81
      %s83 = sphi 0, %s81
      %s84 = sphi 0, %s83
      %s98 = sphi 0, %s84
      %s106 = sphi 0, %s108
      %s109 = sphi 0, %s106
      %s110 = sphi 0, %s109
      %s126 = sphi 0, %s110
    $region4: #{tpu_custom_call.1} parent=1 // loop_header_branch
      %15 = sbr.rel (%p13) target = $region8
    $region5: #{tpu_custom_call.1} parent=1 // loop_body
      %s17 = ssub.s32 %s12, 1
      %s18 = ssub.s32 %s12, 2
      %s25 = sadd.s32 1, %s20
      %p26 = scmp.ge.s32.totalorder %s25, 1
      %s27 = scalar_select %p26, 0, %s25
      %s28 = sadd.s32 1, %s19
      %s29 = scalar_select %p26, %s28, %s19
      %p30 = scmp.ge.s32.totalorder %s29, 2
      %s31 = scalar_select %p30, 0, %s29
      %s32 = ssub.s32 %s19, %s31
      %s33 = ssub.s32 %s20, %s27
      %s34 = sor.u32 %s32, %s33
      %p35 = scmp.eq.s32.totalorder %s34, 0
      %s37 = sadd.s32 %s36, 1
      %s38 = scalar_select %p35, %s36, %s37
      %p41 = pneg %p35
      %p42 = scmp.eq.s32.totalorder %s12, 1
      %p43 = por %p41, %p42
      %p44 = scmp.ne.s32.totalorder %s36, %s39
      %p45 = scmp.eq.s32.totalorder %s12, 0
      %p46 = por %p44, %p45
      %p47 = scmp.ne.s32.totalorder %s36, %s39
      %p48 = scmp.eq.s32.totalorder %s17, 1
      %p49 = por %p47, %p48
      %p50 = scmp.ne.s32.totalorder %s39, %s40
      %p51 = scmp.eq.s32.totalorder %s17, 0
      %p52 = por %p50, %p51
      %p53 = scmp.ne.s32.totalorder %s39, %s40
      %p54 = scmp.eq.s32.totalorder %s18, 1
      %p55 = por %p53, %p54
      %p57 = scmp.ne.s32.totalorder %s40, %s56
      %p58 = scmp.eq.s32.totalorder %s18, 0
      %p59 = por %p57, %p58
      %s61 = sadd.s32 %s60, 1
      %p64 = scmp.eq.s32.totalorder %s12, 1
      %p65 = scmp.ne.s32.totalorder %s60, %s62
      %p66 = scmp.eq.s32.totalorder %s12, 0
      %p67 = por %p65, %p66
      %p68 = scmp.ne.s32.totalorder %s60, %s62
      %p69 = scmp.eq.s32.totalorder %s17, 1
      %p70 = por %p68, %p69
      %p71 = scmp.ne.s32.totalorder %s62, %s63
      %p72 = scmp.eq.s32.totalorder %s17, 0
      %p73 = por %p71, %p72
      %p74 = scmp.ne.s32.totalorder %s62, %s63
      %p75 = scmp.eq.s32.totalorder %s18, 1
      %p76 = por %p74, %p75
      %p78 = scmp.ne.s32.totalorder %s63, %s77
      %p79 = scmp.eq.s32.totalorder %s18, 0
      %p80 = por %p78, %p79
      %s82 = sadd.s32 %s81, 1
      %p85 = scmp.eq.s32.totalorder %s12, 1
      %p86 = scmp.ne.s32.totalorder %s81, %s83
      %p87 = scmp.eq.s32.totalorder %s12, 0
      %p88 = por %p86, %p87
      %p89 = scmp.ne.s32.totalorder %s81, %s83
      %p90 = scmp.eq.s32.totalorder %s17, 1
      %p91 = por %p89, %p90
      %p92 = scmp.ne.s32.totalorder %s83, %s84
      %p93 = scmp.eq.s32.totalorder %s17, 0
      %p94 = por %p92, %p93
      %p95 = scmp.ne.s32.totalorder %s83, %s84
      %p96 = scmp.eq.s32.totalorder %s18, 1
      %p97 = por %p95, %p96
      %p99 = scmp.ne.s32.totalorder %s84, %s98
      %p100 = scmp.eq.s32.totalorder %s18, 0
      %p101 = por %p99, %p100
      %s102 = ssub.s32 %s19, %s31
      %s103 = ssub.s32 %s20, %s27
      %s104 = sor.u32 %s102, %s103
      %p105 = scmp.eq.s32.totalorder %s104, 0
      %s107 = sadd.s32 %s106, 1
      %s108 = scalar_select %p105, %s106, %s107
      %p111 = pneg %p105
      %p112 = scmp.eq.s32.totalorder %s12, 1
      %p113 = por %p111, %p112
      %p114 = scmp.ne.s32.totalorder %s106, %s109
      %p115 = scmp.eq.s32.totalorder %s12, 0
      %p116 = por %p114, %p115
      %p117 = scmp.ne.s32.totalorder %s106, %s109
      %p118 = scmp.eq.s32.totalorder %s17, 1
      %p119 = por %p117, %p118
      %p120 = scmp.ne.s32.totalorder %s109, %s110
      %p121 = scmp.eq.s32.totalorder %s17, 0
      %p122 = por %p120, %p121
      %p123 = scmp.ne.s32.totalorder %s109, %s110
      %p124 = scmp.eq.s32.totalorder %s18, 1
      %p125 = por %p123, %p124
      %p127 = scmp.ne.s32.totalorder %s110, %s126
      %p128 = scmp.eq.s32.totalorder %s18, 0
      %p129 = por %p127, %p128
      %p130 = scmp.le.s32.totalorder 1, %s12
      %p131 = scmp.lt.s32.totalorder %s12, 3
      %p132 = pnand %p130, %p131
      %p133 = pneg %p132
      // Predicated region
      $region9: #{tpu_custom_call.1} parent=5 // pred_check
        _
      $region10: #{tpu_custom_call.1} parent=5 // pred_check_branch
        %135 = sbr.rel (%p132) target = $region12
      $region11: #{tpu_custom_call.1} parent=5 // pred_region
        %s136 = ssub.s32 %s12, 1
        // Predicated region
        $region13: #{tpu_custom_call.1} parent=11 // pred_check
          %p137 = pneg %p73
        $region14: #{tpu_custom_call.1} parent=11 // pred_check_branch
          %139 = sbr.rel (%p137) target = $region16
        $region15: #{tpu_custom_call.1} parent=11 // pred_region
          _
        $region16: #{tpu_custom_call.1} parent=11 // pred_fallthru
          _
        // Predicated region
        $region17: #{tpu_custom_call.1} parent=11 // pred_check
          %p140 = pneg %p94
        $region18: #{tpu_custom_call.1} parent=11 // pred_check_branch
          %142 = sbr.rel (%p140) target = $region20
        $region19: #{tpu_custom_call.1} parent=11 // pred_region
          _
        $region20: #{tpu_custom_call.1} parent=11 // pred_fallthru
          _
      $region12: #{tpu_custom_call.1} parent=5 // pred_fallthru
        _
      %p143 = scmp.lt.s32.totalorder %s12, 2
      // Predicated region
      $region21: #{tpu_custom_call.1} parent=5 // pred_check
        %p144 = pneg %p143
      $region22: #{tpu_custom_call.1} parent=5 // pred_check_branch
        %146 = sbr.rel (%p144) target = $region24
      $region23: #{tpu_custom_call.1} parent=5 // pred_region
        // Predicated region
        $region25: #{tpu_custom_call.1} parent=23 // pred_check
          %p147 = pneg %p46
        $region26: #{tpu_custom_call.1} parent=23 // pred_check_branch
          %149 = sbr.rel (%p147) target = $region28
        $region27: #{tpu_custom_call.1} parent=23 // pred_region
          %s150 = smul.u32 2, %s20
          %p151 = scmp.lt.s32.totalorder %s19, 1
          %s152 = scalar_select %p151, %s19, 1
          %p153 = scmp.lt.s32.totalorder %s150, 1
          %s154 = scalar_select %p153, %s150, 1
          %s155 = smul.addr %s152, 28
          %s156 = sadd.s32 %s154, %s155
          %s157 = smul.addr %s156, 4
          %s158 = scalar_lea.vmem %s0, %s157
          %s159 = smul.u32 2, %s20
        $region28: #{tpu_custom_call.1} parent=23 // pred_fallthru
          _
      $region24: #{tpu_custom_call.1} parent=5 // pred_fallthru
        _
      %p160 = scmp.le.s32.totalorder 1, %s12
      %p161 = scmp.lt.s32.totalorder %s12, 3
      %p162 = pnand %p160, %p161
      %p163 = pneg %p162
      // Predicated region
      $region29: #{tpu_custom_call.1} parent=5 // pred_check
        _
      $region30: #{tpu_custom_call.1} parent=5 // pred_check_branch
        %165 = sbr.rel (%p162) target = $region32
      $region31: #{tpu_custom_call.1} parent=5 // pred_region
        %s166 = ssub.s32 %s12, 1
        %s167 = smul.u32 2, %s22
        %p168 = scmp.lt.s32.totalorder %s21, 1
        %s169 = scalar_select %p168, %s21, 1
        %p170 = scmp.lt.s32.totalorder %s167, 1
        %s171 = scalar_select %p170, %s167, 1
        %s172 = smul.addr %s169, 28
        %s173 = sadd.s32 %s171, %s172
        %s174 = smul.addr %s173, 4
        %s175 = scalar_lea.vmem %s0, %s174
        %p176 = pneg %p52
        %p177 = pneg %p49
        %p178 = pneg %p73
        %p179 = pneg %p70
        %p180 = pneg %p94
        %p181 = pneg %p91
        %p182 = pneg %p122
        %p183 = pneg %p119
        %s184 = sand.u32 %s109, 1
        %s185 = scalar_lea.sflag [#allocation3], %s184
        %s186 = sand.u32 %s109, 1
        %s187 = smul.addr %s186, 16
        %s188 = scalar_lea.vmem [#allocation2], %s187
        %s189 = smul.u32 2, %s22
        %p190 = scmp.lt.s32.totalorder %s21, 1
        %s191 = scalar_select %p190, %s21, 1
        %p192 = scmp.lt.s32.totalorder %s189, 1
        %s193 = scalar_select %p192, %s189, 1
        %s194 = smul.addr %s191, 28
        %s195 = sadd.s32 %s193, %s194
        %s196 = smul.addr %s195, 4
        %s197 = scalar_lea.vmem %s0, %s196
        %s198 = smul.u32 2, %s22
        %s199 = smul.u32 2, %s22
        %v201 = vld [vmem:[%s197] sm:$0xff]
        %v202 = vld [vmem:[%s197 + $0x8] sm:$0xff]
        %v203 = vld [vmem:[%s197 + $0x10] sm:$0xff]
        %v204 = vld [vmem:[%s197 + $0x18] sm:$0xff]
        %v205 = vld [vmem:[%s197 + $0x20] sm:$0xff]
        %v206 = vld [vmem:[%s197 + $0x28] sm:$0xff]
        %v207 = vld [vmem:[%s197 + $0x30] sm:$0xff]
        %v208 = vld [vmem:[%s197 + $0x38] sm:$0xff]
        %v209 = vld [vmem:[%s197 + $0x40] sm:$0xff]
        %v210 = vld [vmem:[%s197 + $0x48] sm:$0xff]
        %v211 = vld [vmem:[%s197 + $0x50] sm:$0xff]
        %v212 = vld [vmem:[%s197 + $0x58] sm:$0xff]
        %v213 = vld [vmem:[%s197 + $0x60] sm:$0xff]
        %v214 = vld [vmem:[%s197 + $0x68] sm:$0x33]
        %v215 = vld [vmem:[%s1] sm:$0xf]
        %v216 = vld [vmem:[%s2] sm:$0xff]
        %218 = vset.pattern.permute.xlu0 0
        %219 = vperm.xlu0 %218, %v216
        %v220 = vpop.permute.xlu0 %219
        %v236 = vunpack.c.l.b16 %v201
        %v237 = vunpack.c.h.b16 %v201
        %v238 = vunpack.c.l.b16 %v202
        %v239 = vunpack.c.h.b16 %v202
        %v240 = vunpack.c.l.b16 %v203
        %v241 = vunpack.c.h.b16 %v203
        %v242 = vunpack.c.l.b16 %v204
        %v243 = vunpack.c.h.b16 %v204
        %v244 = vunpack.c.l.b16 %v205
        %v245 = vunpack.c.h.b16 %v205
        %v246 = vunpack.c.l.b16 %v206
        %v247 = vunpack.c.h.b16 %v206
        %v248 = vunpack.c.l.b16 %v207
        %v249 = vunpack.c.h.b16 %v207
        %v250 = vunpack.c.l.b16 %v208
        %v251 = vunpack.c.h.b16 %v208
        %v252 = vunpack.c.l.b16 %v209
        %v253 = vunpack.c.h.b16 %v209
        %v254 = vunpack.c.l.b16 %v210
        %v255 = vunpack.c.h.b16 %v210
        %v256 = vunpack.c.l.b16 %v211
        %v257 = vunpack.c.h.b16 %v211
        %v258 = vunpack.c.l.b16 %v212
        %v259 = vunpack.c.h.b16 %v212
        %v260 = vunpack.c.l.b16 %v213
        %v261 = vunpack.c.h.b16 %v213
        %v262 = vunpack.c.l.b16 %v214
        %v263 = vunpack.c.h.b16 %v214
        %v264 = vpack.c.b16 %v238, %v236
        %v265 = vpack.c.b16 %v239, %v237
        %v266 = vpack.c.b16 %v242, %v240
        %v267 = vpack.c.b16 %v243, %v241
        %v268 = vpack.c.b16 %v246, %v244
        %v269 = vpack.c.b16 %v247, %v245
        %v270 = vpack.c.b16 %v250, %v248
        %v271 = vpack.c.b16 %v251, %v249
        %v272 = vpack.c.b16 %v254, %v252
        %v273 = vpack.c.b16 %v255, %v253
        %v274 = vpack.c.b16 %v258, %v256
        %v275 = vpack.c.b16 %v259, %v257
        %v276 = vpack.c.b16 %v262, %v260
        %v277 = vpack.c.b16 %v263, %v261
        %vm290 = vcmask 883712
        %v292 = vsel %vm290, %v215, 0
        %vm294 = vcmask 1045504
        %v296 = vsel %vm294, %v276, 0
        %v299 = vsel %vm294, %v277, 0
        %301 = vmatpush.bf16.msra.mxu0 0
        %302 = vmatpush.bf16.msra.mxu0 %v296
        %303 = vmatpush.bf16.msra.mxu0 %v274
        %304 = vmatpush.bf16.msra.mxu0 %v272
        %305 = vmatpush.bf16.msra.mxu0 %v270
        %306 = vmatpush.bf16.msra.mxu0 %v268
        %307 = vmatpush.bf16.msra.mxu0 %v266
        %308 = vmatpush.bf16.msra.mxu0 %v264
        %309 = vmatmul.bf16.gmra.mxu0 %v292
        %v310 = vpop.f32.mrf.mxu0
        %v311 = vadd.f32 %v220, %v310
        %v312 = vpop.f32.mrf.mxu0
        %313 = vdwg.mxu0
        %314 = vmatpush.bf16.msra.mxu0 0
        %315 = vmatpush.bf16.msra.mxu0 %v299
        %316 = vmatpush.bf16.msra.mxu0 %v275
        %317 = vmatpush.bf16.msra.mxu0 %v273
        %318 = vmatpush.bf16.msra.mxu0 %v271
        %319 = vmatpush.bf16.msra.mxu0 %v269
        %320 = vmatpush.bf16.msra.mxu0 %v267
        %321 = vmatpush.bf16.msra.mxu0 %v265
        %322 = vmatmul.bf16.gmra.mxu0 %v292
        %v323 = vpop.f32.mrf.mxu0
        %v324 = vadd.f32 %v220, %v323
        %v325 = vpop.f32.mrf.mxu0
        %326 = vdwg.mxu0
        %327 = vst [vmem:[%s188] sm:$0xff] %v311
        %328 = vst [vmem:[%s188 + $0x8] sm:$0xff] %v324
        %s329 = sand.u32 %s109, 1
        %s330 = scalar_lea.sflag [#allocation3], %s329
        %s331 = sand.u32 %s109, 1
        %s332 = smul.addr %s331, 16
        %s333 = scalar_lea.vmem [#allocation2], %s332
        // Predicated region
        $region33: #{tpu_custom_call.1} parent=31 // pred_check
          %p334 = pneg %p119
        $region34: #{tpu_custom_call.1} parent=31 // pred_check_branch
          %336 = sbr.rel (%p334) target = $region36
        $region35: #{tpu_custom_call.1} parent=31 // pred_region
          %s337 = smul.u32 2, %s22
          %339 = vsyncadd %s330, 0
          %s340 = smul.addr %s21, 2
          %s341 = sadd.s32 %s337, %s340
          %s342 = smul.addr %s341, 8
          %s343 = scalar_lea.hbm %s3, %s342
          %s345 = sshll.u32 %s333, 4
          %s346 = int_to_ptr.vmem [resolvable:$true] %s345
          %s347 = sshll.u32 %s343, 4
          %s348 = int_to_ptr.hbm [resolvable:$true] %s347
          %350 = dma.vmem_to_hbm [thread:$0]  %s346, 256, %s348, %s330
        $region36: #{tpu_custom_call.1} parent=31 // pred_fallthru
          _
      $region32: #{tpu_custom_call.1} parent=5 // pred_fallthru
        _
      %p351 = scmp.le.s32.totalorder 2, %s12
      // Predicated region
      $region37: #{tpu_custom_call.1} parent=5 // pred_check
        %p352 = pneg %p351
      $region38: #{tpu_custom_call.1} parent=5 // pred_check_branch
        %354 = sbr.rel (%p352) target = $region40
      $region39: #{tpu_custom_call.1} parent=5 // pred_region
        %s355 = ssub.s32 %s12, 2
        // Predicated region
        $region41: #{tpu_custom_call.1} parent=39 // pred_check
          %p356 = pneg %p125
        $region42: #{tpu_custom_call.1} parent=39 // pred_check_branch
          %358 = sbr.rel (%p356) target = $region44
        $region43: #{tpu_custom_call.1} parent=39 // pred_region
          %s359 = sand.u32 %s110, 1
          %s360 = scalar_lea.sflag [#allocation3], %s359
          %s361 = sand.u32 %s110, 1
          %s362 = smul.addr %s361, 16
          %s363 = scalar_lea.vmem [#allocation2], %s362
          %365 = dma.done %s360, 256
        $region44: #{tpu_custom_call.1} parent=39 // pred_fallthru
          _
      $region40: #{tpu_custom_call.1} parent=5 // pred_fallthru
        _
    $region6: #{tpu_custom_call.1} parent=1 // loop_footer
      %s16 = sadd.s32 1, %s12
    $region7: #{tpu_custom_call.1} parent=1 // loop_footer_branch
      %11 = sbr.rel target = $region3
    $region8: #{tpu_custom_call.1} parent=1 // loop_exit
      _
    %366 = vsyncpa [#allocation3], 1
    %s367 = scalar_lea.sflag [#allocation3], 1
    %368 = vsyncpa %s367, 1

</llo_original>
